<compile_context>
chip_gen: v7x
topology: tpu7x:2x2x1
jax: 0.10.0
libtpu: 0.0.40
codegen_flags: <defaults>
</compile_context>

<pallas_src>
import jax
import jax.numpy as jnp
from jax import lax
from jax.experimental import pallas as pl
from jax.experimental.pallas import tpu as pltpu


def _tensorcores_per_chip() -> int:
    """Best-effort TensorCore count (2 on v7x, 1 on v5e/v6e); safe fallback 1."""
    try:
        info = pltpu.get_tpu_info()
        for attr in ("num_cores", "tensorcores_per_chip", "num_tensorcores",
                     "cores_per_chip"):
            val = getattr(info, attr, None)
            if isinstance(val, int) and val > 0:
                return val
    except Exception:
        pass
    return 1


def _edge_cross(da, db, xa, za, ex, ez):
    """Does edge (a, b) cross the plane, and where (x, z at plane height).

    For a genuine crossing |da - db| = |da| + |db| > 0, so no denominator
    guard is needed; non-crossing lanes may produce inf/NaN which the caller
    MUST discard with a select (jnp.where), never a mask-multiply.
    """
    crossing = (da * db) < 0.0
    t = da * pl.reciprocal(da - db, approx=True)   # EUP slot, ~free
    px = xa + t * ex
    pz = za + t * ez
    return crossing, px, pz


def _make_kernel(n_chunks: int, ch: int):
    """Kernel over one (1, 9, S, 128) triangle block; S = n_chunks * ch."""

    def kernel(heights_ref, tri_ref, out_ref):
        b = pl.program_id(0)
        f = pl.program_id(2)

        @pl.when(f == 0)
        def _():
            out_ref[...] = jnp.zeros_like(out_ref)

        h = (heights_ref[b, 0], heights_ref[b, 1], heights_ref[b, 2])

        def process(c, accs):
            row = c * ch
            if not isinstance(row, int):
                row = pl.multiple_of(row, ch)

            def coord(k):
                # Read each coordinate slice straight from the ref (8 sublanes)
                # so the live working set stays well under 64 vregs.
                return tri_ref[0, k, pl.ds(row, ch), :]

            x0, y0, z0 = coord(0), coord(1), coord(2)
            x1, y1, z1 = coord(3), coord(4), coord(5)
            x2, y2, z2 = coord(6), coord(7), coord(8)

            # Plane-independent edge deltas (hoisted out of the 3-plane loop).
            ex01, ez01 = x1 - x0, z1 - z0
            ex12, ez12 = x2 - x1, z2 - z1
            ex20, ez20 = x0 - x2, z0 - z2

            new_accs = []
            for m in range(3):                      # chest, belly, hips
                d0 = y0 - h[m]
                d1 = y1 - h[m]
                d2 = y2 - h[m]
                c01, px01, pz01 = _edge_cross(d0, d1, x0, z0, ex01, ez01)
                c12, px12, pz12 = _edge_cross(d1, d2, x1, z1, ex12, ez12)
                c20, px20, pz20 = _edge_cross(d2, d0, x2, z2, ex20, ez20)
                b01 = jnp.logical_and(c01, c12)
                b12 = jnp.logical_and(c12, c20)
                b20 = jnp.logical_and(c20, c01)
                # Exactly one edge pair is valid for a triangle crossed by the
                # plane, so masked accumulation of (dx, dz) + a single sqrt
                # yields the segment length (3 sqrts/triangle, not 9).
                dx = (jnp.where(b01, px01 - px12, 0.0)
                      + jnp.where(b12, px12 - px20, 0.0)
                      + jnp.where(b20, px20 - px01, 0.0))
                dz = (jnp.where(b01, pz01 - pz12, 0.0)
                      + jnp.where(b12, pz12 - pz20, 0.0)
                      + jnp.where(b20, pz20 - pz01, 0.0))
                seg = jnp.sqrt(dx * dx + dz * dz)   # (ch, 128)
                new_accs.append(accs[m] + seg)
            return tuple(new_accs)

        zeros = jnp.zeros((ch, 128), jnp.float32)
        accs = (zeros, zeros, zeros)
        if n_chunks == 1:
            accs = process(0, accs)
        else:
            accs = lax.fori_loop(0, n_chunks, process, accs)

        for m in range(3):
            out_ref[0, m] += accs[m]

    return kernel


def cwh_measurements(triangles, face_indices, bcs, *,
                     tile_sublanes=128, f_splits=None):
    """triangles: (B, F, 3, 3) f32; face_indices: (3,) i32; bcs: (3, 3) f32."""
    B, F = triangles.shape[:2]

    # ---- glue: plane heights (matches (triangles[:, fidx] * bcs).sum(1)[:, 1]) ----
    sel = triangles[:, face_indices]                       # (B, 3meas, 3verts, 3xyz)
    verts = (sel * bcs[None, :, :, None]).sum(axis=2)      # (B, 3meas, 3xyz)
    heights = verts[..., 1].astype(jnp.float32)            # (B, 3)

    # ---- tiling ----
    CH = 8                                                 # sublanes per sub-chunk
    lane_rows = -(-F // 128)
    S = min(tile_sublanes, ((lane_rows + CH - 1) // CH) * CH)
    chunk = S * 128                                        # triangles per grid step
    if f_splits is None:
        # Only split the F range when the chip has more TensorCores than the
        # batch provides parallel blocks (v7x); 1 on single-TC v5e/v6e.
        f_splits = max(1, -(-_tensorcores_per_chip() // max(B, 1)))
    f_splits = max(1, min(f_splits, -(-F // chunk)))
    steps = -(-F // (f_splits * chunk))                    # steps per split
    Fp = f_splits * steps * chunk
    Lp = Fp // 128

    # ---- glue: repack triangles into lane-dense (B, 9, Lp, 128) layout ----
    tri = triangles.reshape(B, F, 9).astype(jnp.float32)
    tri = jnp.transpose(tri, (0, 2, 1))                    # (B, 9, F)
    if Fp != F:
        # Padded triangles sit far above any plane -> never cross -> seg == 0.
        tri = jnp.pad(tri, ((0, 0), (0, 0), (0, Fp - F)), constant_values=1e6)
    tri = tri.reshape(B, 9, Lp, 128)

    kernel = _make_kernel(n_chunks=S // CH, ch=CH)
    out = pl.pallas_call(
        kernel,
        out_shape=jax.ShapeDtypeStruct((B * f_splits, 3, CH, 128), jnp.float32),
        grid_spec=pltpu.PrefetchScalarGridSpec(
            num_scalar_prefetch=0,
            grid=(B, f_splits, steps),
            in_specs=[
                pl.BlockSpec(memory_space=pltpu.MemorySpace.SMEM),   # heights
                pl.BlockSpec((1, 9, S, 128),
                             lambda b, s, f: (b, 0, s * steps + f, 0)),
            ],
            out_specs=pl.BlockSpec((1, 3, CH, 128),
                                   lambda b, s, f: (b * f_splits + s, 0, 0, 0)),
        ),
        compiler_params=pltpu.CompilerParams(
            dimension_semantics=("parallel", "parallel", "arbitrary")),
    )(heights, tri)

    # Final split/sublane/lane reduction done once, outside the hot loop.
    values = out.reshape(B, f_splits, 3, CH, 128).sum(axis=(1, 3, 4))  # (B, 3)

    names = ("chest", "belly", "hips")
    return {
        name: {"value": values[:, i], "plane_height": heights[:, i]}
        for i, name in enumerate(names)
    }


def _reference_values(triangles, heights):
    """Pure-jnp reference for the segment-length sums (exact div / sqrt)."""
    v = triangles.astype(jnp.float32)
    x, y, z = v[..., 0], v[..., 1], v[..., 2]             # (B, F, 3verts)
    totals = []
    for m in range(3):
        h = heights[:, m].reshape(-1, 1, 1)               # (B, 1, 1)
        d = y - h                                         # (B, F, 3)
        cross = []
        for a, b in ((0, 1), (1, 2), (2, 0)):
            da, db = d[..., a], d[..., b]
            c = (da * db) < 0.0
            den = da - db
            den = jnp.where(jnp.abs(den) > 1e-20, den, 1.0)
            t = da / den
            px = x[..., a] + t * (x[..., b] - x[..., a])
            pz = z[..., a] + t * (z[..., b] - z[..., a])
            cross.append((c, px, pz))

        def pair(i, j):
            ci, pxi, pzi = cross[i]
            cj, pxj, pzj = cross[j]
            both = jnp.logical_and(ci, cj)
            return jnp.where(both,
                             jnp.sqrt((pxi - pxj) ** 2 + (pzi - pzj) ** 2), 0.0)

        seg = pair(0, 1) + pair(1, 2) + pair(2, 0)        # (B, F)
        totals.append(seg.sum(axis=1))
    return jnp.stack(totals, axis=1)                      # (B, 3)


if __name__ == "__main__":
    key = jax.random.PRNGKey(0)
    B, F = 2, 512
    # Synthetic mesh triangles (B, F, 3 vertices, 3 coords).
    triangles = 0.5 * jax.random.normal(key, (B, F, 3, 3), dtype=jnp.float32)

    # Deterministic stand-ins for the yaml-defined landmark faces + barycentrics.
    face_indices = jnp.array([7, 133, 257], dtype=jnp.int32)   # chest, belly, hips
    bcs = jnp.array([[0.20, 0.30, 0.50],
                     [0.40, 0.40, 0.20],
                     [0.25, 0.25, 0.50]], dtype=jnp.float32)

    out = jax.jit(cwh_measurements)(triangles, face_indices, bcs)
    out = jax.block_until_ready(out)

    vals = jnp.stack([out[n]["value"] for n in ("chest", "belly", "hips")], axis=1)
    hts = jnp.stack([out[n]["plane_height"] for n in ("chest", "belly", "hips")], axis=1)
    assert vals.shape == (B, 3) and hts.shape == (B, 3)
    assert bool(jnp.all(jnp.isfinite(vals))) and bool(jnp.all(jnp.isfinite(hts)))

    ref = _reference_values(triangles, hts)
    assert bool(jnp.allclose(vals, ref, rtol=1e-2, atol=1e-2)), (vals, ref)

    print("KERNEL_OK")
</pallas_src>

<mosaic_0001>
module attributes {stable_mosaic.version = 11 : i64} {
  func.func @kernel(%arg0: i32, %arg1: i32, %arg2: i32, %arg3: memref<2x3xf32, #tpu.memory_space<smem>>, %arg4: memref<1x9x8x128xf32, #tpu.memory_space<vmem>>, %arg5: memref<1x3x8x128xf32, #tpu.memory_space<vmem>>) attributes {dimension_semantics = [#tpu.dimension_semantics<parallel>, #tpu.dimension_semantics<parallel>, #tpu.dimension_semantics<arbitrary>], iteration_bounds = array<i64: 2, 1, 1>, scalar_prefetch = 0 : i64, scratch_operands = 0 : i64, tpu.core_type = #tpu.core_type<tc>, window_params = [{transform_indices = @transform_0, window_bounds = array<i64: 2, 3>}, {transform_indices = @transform_1, window_bounds = array<i64: 1, 9, 8, 128>}, {transform_indices = @transform_2, window_bounds = array<i64: 1, 3, 8, 128>}]} {
    %c0_i32 = arith.constant 0 : i32
    %0 = arith.cmpi eq, %arg2, %c0_i32 : i32
    %1 = arith.extui %0 : i1 to i32
    %c0_i32_0 = arith.constant 0 : i32
    %2 = arith.cmpi ne, %1, %c0_i32_0 : i32
    scf.if %2 {
      %cst_82 = arith.constant 0.000000e+00 : f32
      %250 = vector.broadcast %cst_82 : f32 to vector<1x3x8x128xf32>
      %c0_83 = arith.constant 0 : index
      %c0_84 = arith.constant 0 : index
      %c0_85 = arith.constant 0 : index
      %c0_86 = arith.constant 0 : index
      %251 = vector.load %arg5[%c0_83, %c0_84, %c0_85, %c0_86] : memref<1x3x8x128xf32, #tpu.memory_space<vmem>>, vector<1x3x8x128xf32>
      tpu.vector_store %arg5[%c0_83, %c0_84, %c0_85, %c0_86], %250 {strides = array<i32>} : memref<1x3x8x128xf32, #tpu.memory_space<vmem>>, vector<1x3x8x128xf32>,
    } else {
    }
    %3 = arith.index_cast %arg0 : i32 to index
    %c0 = arith.constant 0 : index
    %4 = memref.load %arg3[%3, %c0] : memref<2x3xf32, #tpu.memory_space<smem>>
    %5 = arith.index_cast %arg0 : i32 to index
    %c1 = arith.constant 1 : index
    %6 = memref.load %arg3[%5, %c1] : memref<2x3xf32, #tpu.memory_space<smem>>
    %7 = arith.index_cast %arg0 : i32 to index
    %c2 = arith.constant 2 : index
    %8 = memref.load %arg3[%7, %c2] : memref<2x3xf32, #tpu.memory_space<smem>>
    %cst = arith.constant 0.000000e+00 : f32
    %9 = vector.broadcast %cst : f32 to vector<8x128xf32>
    %c0_1 = arith.constant 0 : index
    %c0_2 = arith.constant 0 : index
    %c0_3 = arith.constant 0 : index
    %c0_4 = arith.constant 0 : index
    %10 = vector.load %arg4[%c0_1, %c0_2, %c0_3, %c0_4] : memref<1x9x8x128xf32, #tpu.memory_space<vmem>>, vector<1x1x8x128xf32>
    %11 = vector.shape_cast %10 : vector<1x1x8x128xf32> to vector<8x128xf32>
    %c0_5 = arith.constant 0 : index
    %c1_6 = arith.constant 1 : index
    %c0_7 = arith.constant 0 : index
    %c0_8 = arith.constant 0 : index
    %12 = vector.load %arg4[%c0_5, %c1_6, %c0_7, %c0_8] : memref<1x9x8x128xf32, #tpu.memory_space<vmem>>, vector<1x1x8x128xf32>
    %13 = vector.shape_cast %12 : vector<1x1x8x128xf32> to vector<8x128xf32>
    %c0_9 = arith.constant 0 : index
    %c2_10 = arith.constant 2 : index
    %c0_11 = arith.constant 0 : index
    %c0_12 = arith.constant 0 : index
    %14 = vector.load %arg4[%c0_9, %c2_10, %c0_11, %c0_12] : memref<1x9x8x128xf32, #tpu.memory_space<vmem>>, vector<1x1x8x128xf32>
    %15 = vector.shape_cast %14 : vector<1x1x8x128xf32> to vector<8x128xf32>
    %c0_13 = arith.constant 0 : index
    %c3 = arith.constant 3 : index
    %c0_14 = arith.constant 0 : index
    %c0_15 = arith.constant 0 : index
    %16 = vector.load %arg4[%c0_13, %c3, %c0_14, %c0_15] : memref<1x9x8x128xf32, #tpu.memory_space<vmem>>, vector<1x1x8x128xf32>
    %17 = vector.shape_cast %16 : vector<1x1x8x128xf32> to vector<8x128xf32>
    %c0_16 = arith.constant 0 : index
    %c4 = arith.constant 4 : index
    %c0_17 = arith.constant 0 : index
    %c0_18 = arith.constant 0 : index
    %18 = vector.load %arg4[%c0_16, %c4, %c0_17, %c0_18] : memref<1x9x8x128xf32, #tpu.memory_space<vmem>>, vector<1x1x8x128xf32>
    %19 = vector.shape_cast %18 : vector<1x1x8x128xf32> to vector<8x128xf32>
    %c0_19 = arith.constant 0 : index
    %c5 = arith.constant 5 : index
    %c0_20 = arith.constant 0 : index
    %c0_21 = arith.constant 0 : index
    %20 = vector.load %arg4[%c0_19, %c5, %c0_20, %c0_21] : memref<1x9x8x128xf32, #tpu.memory_space<vmem>>, vector<1x1x8x128xf32>
    %21 = vector.shape_cast %20 : vector<1x1x8x128xf32> to vector<8x128xf32>
    %c0_22 = arith.constant 0 : index
    %c6 = arith.constant 6 : index
    %c0_23 = arith.constant 0 : index
    %c0_24 = arith.constant 0 : index
    %22 = vector.load %arg4[%c0_22, %c6, %c0_23, %c0_24] : memref<1x9x8x128xf32, #tpu.memory_space<vmem>>, vector<1x1x8x128xf32>
    %23 = vector.shape_cast %22 : vector<1x1x8x128xf32> to vector<8x128xf32>
    %c0_25 = arith.constant 0 : index
    %c7 = arith.constant 7 : index
    %c0_26 = arith.constant 0 : index
    %c0_27 = arith.constant 0 : index
    %24 = vector.load %arg4[%c0_25, %c7, %c0_26, %c0_27] : memref<1x9x8x128xf32, #tpu.memory_space<vmem>>, vector<1x1x8x128xf32>
    %25 = vector.shape_cast %24 : vector<1x1x8x128xf32> to vector<8x128xf32>
    %c0_28 = arith.constant 0 : index
    %c8 = arith.constant 8 : index
    %c0_29 = arith.constant 0 : index
    %c0_30 = arith.constant 0 : index
    %26 = vector.load %arg4[%c0_28, %c8, %c0_29, %c0_30] : memref<1x9x8x128xf32, #tpu.memory_space<vmem>>, vector<1x1x8x128xf32>
    %27 = vector.shape_cast %26 : vector<1x1x8x128xf32> to vector<8x128xf32>
    %28 = arith.subf %17, %11 : vector<8x128xf32>
    %29 = arith.subf %21, %15 : vector<8x128xf32>
    %30 = arith.subf %23, %17 : vector<8x128xf32>
    %31 = arith.subf %27, %21 : vector<8x128xf32>
    %32 = arith.subf %11, %23 : vector<8x128xf32>
    %33 = arith.subf %15, %27 : vector<8x128xf32>
    %34 = vector.broadcast %4 : f32 to vector<8x128xf32>
    %35 = arith.subf %13, %34 : vector<8x128xf32>
    %36 = vector.broadcast %4 : f32 to vector<8x128xf32>
    %37 = arith.subf %19, %36 : vector<8x128xf32>
    %38 = vector.broadcast %4 : f32 to vector<8x128xf32>
    %39 = arith.subf %25, %38 : vector<8x128xf32>
    %40 = arith.mulf %35, %37 : vector<8x128xf32>
    %cst_31 = arith.constant 0.000000e+00 : f32
    %41 = vector.broadcast %cst_31 : f32 to vector<8x128xf32>
    %42 = arith.cmpf olt, %40, %41 : vector<8x128xf32>
    %43 = arith.subf %35, %37 : vector<8x128xf32>
    %44 = tpu.reciprocal %43 {approx = true} : vector<8x128xf32> -> vector<8x128xf32>
    %45 = arith.mulf %35, %44 : vector<8x128xf32>
    %46 = arith.mulf %45, %28 : vector<8x128xf32>
    %47 = arith.addf %11, %46 : vector<8x128xf32>
    %48 = arith.mulf %45, %29 : vector<8x128xf32>
    %49 = arith.addf %15, %48 : vector<8x128xf32>
    %50 = arith.mulf %37, %39 : vector<8x128xf32>
    %cst_32 = arith.constant 0.000000e+00 : f32
    %51 = vector.broadcast %cst_32 : f32 to vector<8x128xf32>
    %52 = arith.cmpf olt, %50, %51 : vector<8x128xf32>
    %53 = arith.subf %37, %39 : vector<8x128xf32>
    %54 = tpu.reciprocal %53 {approx = true} : vector<8x128xf32> -> vector<8x128xf32>
    %55 = arith.mulf %37, %54 : vector<8x128xf32>
    %56 = arith.mulf %55, %30 : vector<8x128xf32>
    %57 = arith.addf %17, %56 : vector<8x128xf32>
    %58 = arith.mulf %55, %31 : vector<8x128xf32>
    %59 = arith.addf %21, %58 : vector<8x128xf32>
    %60 = arith.mulf %39, %35 : vector<8x128xf32>
    %cst_33 = arith.constant 0.000000e+00 : f32
    %61 = vector.broadcast %cst_33 : f32 to vector<8x128xf32>
    %62 = arith.cmpf olt, %60, %61 : vector<8x128xf32>
    %63 = arith.subf %39, %35 : vector<8x128xf32>
    %64 = tpu.reciprocal %63 {approx = true} : vector<8x128xf32> -> vector<8x128xf32>
    %65 = arith.mulf %39, %64 : vector<8x128xf32>
    %66 = arith.mulf %65, %32 : vector<8x128xf32>
    %67 = arith.addf %23, %66 : vector<8x128xf32>
    %68 = arith.mulf %65, %33 : vector<8x128xf32>
    %69 = arith.addf %27, %68 : vector<8x128xf32>
    %70 = arith.andi %42, %52 : vector<8x128xi1>
    %71 = arith.andi %52, %62 : vector<8x128xi1>
    %72 = arith.andi %62, %42 : vector<8x128xi1>
    %73 = arith.subf %47, %57 : vector<8x128xf32>
    %cst_34 = arith.constant 0.000000e+00 : f32
    %74 = vector.broadcast %cst_34 : f32 to vector<8x128xf32>
    %75 = arith.select %70, %73, %74 : vector<8x128xi1>, vector<8x128xf32>
    %76 = arith.subf %57, %67 : vector<8x128xf32>
    %cst_35 = arith.constant 0.000000e+00 : f32
    %77 = vector.broadcast %cst_35 : f32 to vector<8x128xf32>
    %78 = arith.select %71, %76, %77 : vector<8x128xi1>, vector<8x128xf32>
    %79 = arith.addf %75, %78 : vector<8x128xf32>
    %80 = arith.subf %67, %47 : vector<8x128xf32>
    %cst_36 = arith.constant 0.000000e+00 : f32
    %81 = vector.broadcast %cst_36 : f32 to vector<8x128xf32>
    %82 = arith.select %72, %80, %81 : vector<8x128xi1>, vector<8x128xf32>
    %83 = arith.addf %79, %82 : vector<8x128xf32>
    %84 = arith.subf %49, %59 : vector<8x128xf32>
    %cst_37 = arith.constant 0.000000e+00 : f32
    %85 = vector.broadcast %cst_37 : f32 to vector<8x128xf32>
    %86 = arith.select %70, %84, %85 : vector<8x128xi1>, vector<8x128xf32>
    %87 = arith.subf %59, %69 : vector<8x128xf32>
    %cst_38 = arith.constant 0.000000e+00 : f32
    %88 = vector.broadcast %cst_38 : f32 to vector<8x128xf32>
    %89 = arith.select %71, %87, %88 : vector<8x128xi1>, vector<8x128xf32>
    %90 = arith.addf %86, %89 : vector<8x128xf32>
    %91 = arith.subf %69, %49 : vector<8x128xf32>
    %cst_39 = arith.constant 0.000000e+00 : f32
    %92 = vector.broadcast %cst_39 : f32 to vector<8x128xf32>
    %93 = arith.select %72, %91, %92 : vector<8x128xi1>, vector<8x128xf32>
    %94 = arith.addf %90, %93 : vector<8x128xf32>
    %95 = arith.mulf %83, %83 : vector<8x128xf32>
    %96 = arith.mulf %94, %94 : vector<8x128xf32>
    %97 = arith.addf %95, %96 : vector<8x128xf32>
    %98 = math.sqrt %97 : vector<8x128xf32>
    %99 = arith.addf %9, %98 : vector<8x128xf32>
    %100 = vector.broadcast %6 : f32 to vector<8x128xf32>
    %101 = arith.subf %13, %100 : vector<8x128xf32>
    %102 = vector.broadcast %6 : f32 to vector<8x128xf32>
    %103 = arith.subf %19, %102 : vector<8x128xf32>
    %104 = vector.broadcast %6 : f32 to vector<8x128xf32>
    %105 = arith.subf %25, %104 : vector<8x128xf32>
    %106 = arith.mulf %101, %103 : vector<8x128xf32>
    %cst_40 = arith.constant 0.000000e+00 : f32
    %107 = vector.broadcast %cst_40 : f32 to vector<8x128xf32>
    %108 = arith.cmpf olt, %106, %107 : vector<8x128xf32>
    %109 = arith.subf %101, %103 : vector<8x128xf32>
    %110 = tpu.reciprocal %109 {approx = true} : vector<8x128xf32> -> vector<8x128xf32>
    %111 = arith.mulf %101, %110 : vector<8x128xf32>
    %112 = arith.mulf %111, %28 : vector<8x128xf32>
    %113 = arith.addf %11, %112 : vector<8x128xf32>
    %114 = arith.mulf %111, %29 : vector<8x128xf32>
    %115 = arith.addf %15, %114 : vector<8x128xf32>
    %116 = arith.mulf %103, %105 : vector<8x128xf32>
    %cst_41 = arith.constant 0.000000e+00 : f32
    %117 = vector.broadcast %cst_41 : f32 to vector<8x128xf32>
    %118 = arith.cmpf olt, %116, %117 : vector<8x128xf32>
    %119 = arith.subf %103, %105 : vector<8x128xf32>
    %120 = tpu.reciprocal %119 {approx = true} : vector<8x128xf32> -> vector<8x128xf32>
    %121 = arith.mulf %103, %120 : vector<8x128xf32>
    %122 = arith.mulf %121, %30 : vector<8x128xf32>
    %123 = arith.addf %17, %122 : vector<8x128xf32>
    %124 = arith.mulf %121, %31 : vector<8x128xf32>
    %125 = arith.addf %21, %124 : vector<8x128xf32>
    %126 = arith.mulf %105, %101 : vector<8x128xf32>
    %cst_42 = arith.constant 0.000000e+00 : f32
    %127 = vector.broadcast %cst_42 : f32 to vector<8x128xf32>
    %128 = arith.cmpf olt, %126, %127 : vector<8x128xf32>
    %129 = arith.subf %105, %101 : vector<8x128xf32>
    %130 = tpu.reciprocal %129 {approx = true} : vector<8x128xf32> -> vector<8x128xf32>
    %131 = arith.mulf %105, %130 : vector<8x128xf32>
    %132 = arith.mulf %131, %32 : vector<8x128xf32>
    %133 = arith.addf %23, %132 : vector<8x128xf32>
    %134 = arith.mulf %131, %33 : vector<8x128xf32>
    %135 = arith.addf %27, %134 : vector<8x128xf32>
    %136 = arith.andi %108, %118 : vector<8x128xi1>
    %137 = arith.andi %118, %128 : vector<8x128xi1>
    %138 = arith.andi %128, %108 : vector<8x128xi1>
    %139 = arith.subf %113, %123 : vector<8x128xf32>
    %cst_43 = arith.constant 0.000000e+00 : f32
    %140 = vector.broadcast %cst_43 : f32 to vector<8x128xf32>
    %141 = arith.select %136, %139, %140 : vector<8x128xi1>, vector<8x128xf32>
    %142 = arith.subf %123, %133 : vector<8x128xf32>
    %cst_44 = arith.constant 0.000000e+00 : f32
    %143 = vector.broadcast %cst_44 : f32 to vector<8x128xf32>
    %144 = arith.select %137, %142, %143 : vector<8x128xi1>, vector<8x128xf32>
    %145 = arith.addf %141, %144 : vector<8x128xf32>
    %146 = arith.subf %133, %113 : vector<8x128xf32>
    %cst_45 = arith.constant 0.000000e+00 : f32
    %147 = vector.broadcast %cst_45 : f32 to vector<8x128xf32>
    %148 = arith.select %138, %146, %147 : vector<8x128xi1>, vector<8x128xf32>
    %149 = arith.addf %145, %148 : vector<8x128xf32>
    %150 = arith.subf %115, %125 : vector<8x128xf32>
    %cst_46 = arith.constant 0.000000e+00 : f32
    %151 = vector.broadcast %cst_46 : f32 to vector<8x128xf32>
    %152 = arith.select %136, %150, %151 : vector<8x128xi1>, vector<8x128xf32>
    %153 = arith.subf %125, %135 : vector<8x128xf32>
    %cst_47 = arith.constant 0.000000e+00 : f32
    %154 = vector.broadcast %cst_47 : f32 to vector<8x128xf32>
    %155 = arith.select %137, %153, %154 : vector<8x128xi1>, vector<8x128xf32>
    %156 = arith.addf %152, %155 : vector<8x128xf32>
    %157 = arith.subf %135, %115 : vector<8x128xf32>
    %cst_48 = arith.constant 0.000000e+00 : f32
    %158 = vector.broadcast %cst_48 : f32 to vector<8x128xf32>
    %159 = arith.select %138, %157, %158 : vector<8x128xi1>, vector<8x128xf32>
    %160 = arith.addf %156, %159 : vector<8x128xf32>
    %161 = arith.mulf %149, %149 : vector<8x128xf32>
    %162 = arith.mulf %160, %160 : vector<8x128xf32>
    %163 = arith.addf %161, %162 : vector<8x128xf32>
    %164 = math.sqrt %163 : vector<8x128xf32>
    %165 = arith.addf %9, %164 : vector<8x128xf32>
    %166 = vector.broadcast %8 : f32 to vector<8x128xf32>
    %167 = arith.subf %13, %166 : vector<8x128xf32>
    %168 = vector.broadcast %8 : f32 to vector<8x128xf32>
    %169 = arith.subf %19, %168 : vector<8x128xf32>
    %170 = vector.broadcast %8 : f32 to vector<8x128xf32>
    %171 = arith.subf %25, %170 : vector<8x128xf32>
    %172 = arith.mulf %167, %169 : vector<8x128xf32>
    %cst_49 = arith.constant 0.000000e+00 : f32
    %173 = vector.broadcast %cst_49 : f32 to vector<8x128xf32>
    %174 = arith.cmpf olt, %172, %173 : vector<8x128xf32>
    %175 = arith.subf %167, %169 : vector<8x128xf32>
    %176 = tpu.reciprocal %175 {approx = true} : vector<8x128xf32> -> vector<8x128xf32>
    %177 = arith.mulf %167, %176 : vector<8x128xf32>
    %178 = arith.mulf %177, %28 : vector<8x128xf32>
    %179 = arith.addf %11, %178 : vector<8x128xf32>
    %180 = arith.mulf %177, %29 : vector<8x128xf32>
    %181 = arith.addf %15, %180 : vector<8x128xf32>
    %182 = arith.mulf %169, %171 : vector<8x128xf32>
    %cst_50 = arith.constant 0.000000e+00 : f32
    %183 = vector.broadcast %cst_50 : f32 to vector<8x128xf32>
    %184 = arith.cmpf olt, %182, %183 : vector<8x128xf32>
    %185 = arith.subf %169, %171 : vector<8x128xf32>
    %186 = tpu.reciprocal %185 {approx = true} : vector<8x128xf32> -> vector<8x128xf32>
    %187 = arith.mulf %169, %186 : vector<8x128xf32>
    %188 = arith.mulf %187, %30 : vector<8x128xf32>
    %189 = arith.addf %17, %188 : vector<8x128xf32>
    %190 = arith.mulf %187, %31 : vector<8x128xf32>
    %191 = arith.addf %21, %190 : vector<8x128xf32>
    %192 = arith.mulf %171, %167 : vector<8x128xf32>
    %cst_51 = arith.constant 0.000000e+00 : f32
    %193 = vector.broadcast %cst_51 : f32 to vector<8x128xf32>
    %194 = arith.cmpf olt, %192, %193 : vector<8x128xf32>
    %195 = arith.subf %171, %167 : vector<8x128xf32>
    %196 = tpu.reciprocal %195 {approx = true} : vector<8x128xf32> -> vector<8x128xf32>
    %197 = arith.mulf %171, %196 : vector<8x128xf32>
    %198 = arith.mulf %197, %32 : vector<8x128xf32>
    %199 = arith.addf %23, %198 : vector<8x128xf32>
    %200 = arith.mulf %197, %33 : vector<8x128xf32>
    %201 = arith.addf %27, %200 : vector<8x128xf32>
    %202 = arith.andi %174, %184 : vector<8x128xi1>
    %203 = arith.andi %184, %194 : vector<8x128xi1>
    %204 = arith.andi %194, %174 : vector<8x128xi1>
    %205 = arith.subf %179, %189 : vector<8x128xf32>
    %cst_52 = arith.constant 0.000000e+00 : f32
    %206 = vector.broadcast %cst_52 : f32 to vector<8x128xf32>
    %207 = arith.select %202, %205, %206 : vector<8x128xi1>, vector<8x128xf32>
    %208 = arith.subf %189, %199 : vector<8x128xf32>
    %cst_53 = arith.constant 0.000000e+00 : f32
    %209 = vector.broadcast %cst_53 : f32 to vector<8x128xf32>
    %210 = arith.select %203, %208, %209 : vector<8x128xi1>, vector<8x128xf32>
    %211 = arith.addf %207, %210 : vector<8x128xf32>
    %212 = arith.subf %199, %179 : vector<8x128xf32>
    %cst_54 = arith.constant 0.000000e+00 : f32
    %213 = vector.broadcast %cst_54 : f32 to vector<8x128xf32>
    %214 = arith.select %204, %212, %213 : vector<8x128xi1>, vector<8x128xf32>
    %215 = arith.addf %211, %214 : vector<8x128xf32>
    %216 = arith.subf %181, %191 : vector<8x128xf32>
    %cst_55 = arith.constant 0.000000e+00 : f32
    %217 = vector.broadcast %cst_55 : f32 to vector<8x128xf32>
    %218 = arith.select %202, %216, %217 : vector<8x128xi1>, vector<8x128xf32>
    %219 = arith.subf %191, %201 : vector<8x128xf32>
    %cst_56 = arith.constant 0.000000e+00 : f32
    %220 = vector.broadcast %cst_56 : f32 to vector<8x128xf32>
    %221 = arith.select %203, %219, %220 : vector<8x128xi1>, vector<8x128xf32>
    %222 = arith.addf %218, %221 : vector<8x128xf32>
    %223 = arith.subf %201, %181 : vector<8x128xf32>
    %cst_57 = arith.constant 0.000000e+00 : f32
    %224 = vector.broadcast %cst_57 : f32 to vector<8x128xf32>
    %225 = arith.select %204, %223, %224 : vector<8x128xi1>, vector<8x128xf32>
    %226 = arith.addf %222, %225 : vector<8x128xf32>
    %227 = arith.mulf %215, %215 : vector<8x128xf32>
    %228 = arith.mulf %226, %226 : vector<8x128xf32>
    %229 = arith.addf %227, %228 : vector<8x128xf32>
    %230 = math.sqrt %229 : vector<8x128xf32>
    %231 = arith.addf %9, %230 : vector<8x128xf32>
    %c0_58 = arith.constant 0 : index
    %c0_59 = arith.constant 0 : index
    %c0_60 = arith.constant 0 : index
    %c0_61 = arith.constant 0 : index
    %232 = vector.load %arg5[%c0_58, %c0_59, %c0_60, %c0_61] : memref<1x3x8x128xf32, #tpu.memory_space<vmem>>, vector<1x1x8x128xf32>
    %233 = vector.shape_cast %232 : vector<1x1x8x128xf32> to vector<8x128xf32>
    %234 = arith.addf %233, %99 : vector<8x128xf32>
    %c0_62 = arith.constant 0 : index
    %c0_63 = arith.constant 0 : index
    %c0_64 = arith.constant 0 : index
    %c0_65 = arith.constant 0 : index
    %235 = vector.load %arg5[%c0_62, %c0_63, %c0_64, %c0_65] : memref<1x3x8x128xf32, #tpu.memory_space<vmem>>, vector<1x1x8x128xf32>
    %236 = vector.shape_cast %235 : vector<1x1x8x128xf32> to vector<8x128xf32>
    %237 = vector.shape_cast %234 : vector<8x128xf32> to vector<1x1x8x128xf32>
    tpu.vector_store %arg5[%c0_62, %c0_63, %c0_64, %c0_65], %237 {strides = array<i32>} : memref<1x3x8x128xf32, #tpu.memory_space<vmem>>, vector<1x1x8x128xf32>,
    %c0_66 = arith.constant 0 : index
    %c1_67 = arith.constant 1 : index
    %c0_68 = arith.constant 0 : index
    %c0_69 = arith.constant 0 : index
    %238 = vector.load %arg5[%c0_66, %c1_67, %c0_68, %c0_69] : memref<1x3x8x128xf32, #tpu.memory_space<vmem>>, vector<1x1x8x128xf32>
    %239 = vector.shape_cast %238 : vector<1x1x8x128xf32> to vector<8x128xf32>
    %240 = arith.addf %239, %165 : vector<8x128xf32>
    %c0_70 = arith.constant 0 : index
    %c1_71 = arith.constant 1 : index
    %c0_72 = arith.constant 0 : index
    %c0_73 = arith.constant 0 : index
    %241 = vector.load %arg5[%c0_70, %c1_71, %c0_72, %c0_73] : memref<1x3x8x128xf32, #tpu.memory_space<vmem>>, vector<1x1x8x128xf32>
    %242 = vector.shape_cast %241 : vector<1x1x8x128xf32> to vector<8x128xf32>
    %243 = vector.shape_cast %240 : vector<8x128xf32> to vector<1x1x8x128xf32>
    tpu.vector_store %arg5[%c0_70, %c1_71, %c0_72, %c0_73], %243 {strides = array<i32>} : memref<1x3x8x128xf32, #tpu.memory_space<vmem>>, vector<1x1x8x128xf32>,
    %c0_74 = arith.constant 0 : index
    %c2_75 = arith.constant 2 : index
    %c0_76 = arith.constant 0 : index
    %c0_77 = arith.constant 0 : index
    %244 = vector.load %arg5[%c0_74, %c2_75, %c0_76, %c0_77] : memref<1x3x8x128xf32, #tpu.memory_space<vmem>>, vector<1x1x8x128xf32>
    %245 = vector.shape_cast %244 : vector<1x1x8x128xf32> to vector<8x128xf32>
    %246 = arith.addf %245, %231 : vector<8x128xf32>
    %c0_78 = arith.constant 0 : index
    %c2_79 = arith.constant 2 : index
    %c0_80 = arith.constant 0 : index
    %c0_81 = arith.constant 0 : index
    %247 = vector.load %arg5[%c0_78, %c2_79, %c0_80, %c0_81] : memref<1x3x8x128xf32, #tpu.memory_space<vmem>>, vector<1x1x8x128xf32>
    %248 = vector.shape_cast %247 : vector<1x1x8x128xf32> to vector<8x128xf32>
    %249 = vector.shape_cast %246 : vector<8x128xf32> to vector<1x1x8x128xf32>
    tpu.vector_store %arg5[%c0_78, %c2_79, %c0_80, %c0_81], %249 {strides = array<i32>} : memref<1x3x8x128xf32, #tpu.memory_space<vmem>>, vector<1x1x8x128xf32>,
    return
  }
  func.func @transform_0(%arg0: i32, %arg1: i32, %arg2: i32) -> (i32, i32) {
    %c0_i32 = arith.constant 0 : i32
    %c0_i32_0 = arith.constant 0 : i32
    %c0_i32_1 = arith.constant 0 : i32
    return %c0_i32, %c0_i32_0 : i32, i32
  }
  func.func @transform_1(%arg0: i32, %arg1: i32, %arg2: i32) -> (i32, i32, i32, i32) {
    %c1_i32 = arith.constant 1 : i32
    %0 = arith.muli %arg1, %c1_i32 : i32
    %1 = arith.addi %0, %arg2 : i32
    %c0_i32 = arith.constant 0 : i32
    %c0_i32_0 = arith.constant 0 : i32
    %c0_i32_1 = arith.constant 0 : i32
    return %arg0, %c0_i32, %1, %c0_i32_0 : i32, i32, i32, i32
  }
  func.func @transform_2(%arg0: i32, %arg1: i32, %arg2: i32) -> (i32, i32, i32, i32) {
    %c1_i32 = arith.constant 1 : i32
    %0 = arith.muli %arg0, %c1_i32 : i32
    %1 = arith.addi %0, %arg1 : i32
    %c0_i32 = arith.constant 0 : i32
    %c0_i32_0 = arith.constant 0 : i32
    %c0_i32_1 = arith.constant 0 : i32
    %c0_i32_2 = arith.constant 0 : i32
    return %1, %c0_i32, %c0_i32_0, %c0_i32_1 : i32, i32, i32, i32
  }
}

</mosaic_0001>

<llo_original>
// kernel: cwh_measurements.1
$region0: #{cwh_measurements.1}
  #allocation0 [shape = 'u32[]', space=smem, size = 0x4, offset = 0x4, fixed_abs, tag = 'smem constant byte address 0x4 - core index']
  #allocation1 [shape = 'u32[144,128]{1,0:T(1,128)}', space=vmem, size = 0x12000, scoped, tag = 'internal scratch']
  %s0 = inlined_call_operand.vmem [shape: f32[2,3], index: 0, kind: input, shape index: {}]
  %s1 = inlined_call_operand.vmem [shape: f32[2,9,8,128], index: 1, kind: input, shape index: {}]
  %s2 = inlined_call_operand.vmem [shape: f32[2,3,8,128], index: 2, kind: output, shape index: {}]
  %s3 = sld [smem:[#allocation0]]
  $region49: #{cwh_measurements.1} parent=0
    _
  %s5 = ssub.s32 1, %s3
  %s6 = scalar_select 0, %s5, %s3
  $region1: #{cwh_measurements.1} parent=0
    #allocation2 [shape = 'u8[1024]{0}', space=smem, size = 0x400, scoped, tag = 'input window, operand 0, single buffered']
    #allocation3 [shape = 's32[2]{0}', space=sflag, size = 0x8, scoped, tag = 'scoped memory for cwh_measurements.1']
    %7 = vsyncpa [#allocation3], 0
    loop: start=0, step=1, limit=4
    $region2: #{cwh_measurements.1} parent=1 // loop_pre_header
      _
    $region3: #{cwh_measurements.1} parent=1 // loop_header
      %s9 = sphi 0, %s13
      %p10 = scmp.ge.s32.totalorder %s9, 4
      %s16 = sphi 0, %s35
      %s17 = sphi 0, %s31
      %s18 = sphi 0, %s27
      %s19 = sphi 0, %s16
      %s20 = sphi 0, %s17
      %s21 = sphi 0, %s18
      %s22 = sphi 0, %s19
      %s23 = sphi 0, %s20
      %s24 = sphi 0, %s21
      %s36 = sphi 0, %s36
      %s38 = sphi 0, %s36
      %s39 = sphi 0, %s38
      %s53 = sphi 0, %s39
      %s63 = sphi 0, %s65
      %s66 = sphi 0, %s63
      %s67 = sphi 0, %s66
      %s83 = sphi 0, %s67
      %s91 = sphi 0, %s93
      %s94 = sphi 0, %s91
      %s95 = sphi 0, %s94
      %s111 = sphi 0, %s95
    $region4: #{cwh_measurements.1} parent=1 // loop_header_branch
      %12 = sbr.rel (%p10) target = $region8
    $region5: #{cwh_measurements.1} parent=1 // loop_body
      %s14 = ssub.s32 %s9, 1
      %s15 = ssub.s32 %s9, 2
      %s25 = sadd.s32 1, %s18
      %p26 = scmp.ge.s32.totalorder %s25, 1
      %s27 = scalar_select %p26, 0, %s25
      %s28 = sadd.s32 1, %s17
      %s29 = scalar_select %p26, %s28, %s17
      %p30 = scmp.ge.s32.totalorder %s29, 1
      %s31 = scalar_select %p30, 0, %s29
      %s32 = sadd.s32 1, %s16
      %s33 = scalar_select %p30, %s32, %s16
      %p34 = scmp.ge.s32.totalorder %s33, 2
      %s35 = scalar_select %p34, 0, %s33
      %s37 = sadd.s32 %s36, 1
      %p40 = scmp.eq.s32.totalorder %s9, 1
      %p41 = scmp.ne.s32.totalorder %s36, %s38
      %p42 = scmp.eq.s32.totalorder %s9, 0
      %p43 = por %p41, %p42
      %p44 = scmp.ne.s32.totalorder %s36, %s38
      %p45 = scmp.eq.s32.totalorder %s14, 1
      %p46 = por %p44, %p45
      %p47 = scmp.ne.s32.totalorder %s38, %s39
      %p48 = scmp.eq.s32.totalorder %s14, 0
      %p49 = por %p47, %p48
      %p50 = scmp.ne.s32.totalorder %s38, %s39
      %p51 = scmp.eq.s32.totalorder %s15, 1
      %p52 = por %p50, %p51
      %p54 = scmp.ne.s32.totalorder %s39, %s53
      %p55 = scmp.eq.s32.totalorder %s15, 0
      %p56 = por %p54, %p55
      %s57 = sadd.s32 %s17, %s18
      %s58 = sadd.s32 %s31, %s27
      %s59 = ssub.s32 %s16, %s35
      %s60 = ssub.s32 %s57, %s58
      %s61 = sor.u32 %s59, %s60
      %p62 = scmp.eq.s32.totalorder %s61, 0
      %s64 = sadd.s32 %s63, 1
      %s65 = scalar_select %p62, %s63, %s64
      %p68 = pneg %p62
      %p69 = scmp.eq.s32.totalorder %s9, 1
      %p70 = por %p68, %p69
      %p71 = scmp.ne.s32.totalorder %s63, %s66
      %p72 = scmp.eq.s32.totalorder %s9, 0
      %p73 = por %p71, %p72
      %p74 = scmp.ne.s32.totalorder %s63, %s66
      %p75 = scmp.eq.s32.totalorder %s14, 1
      %p76 = por %p74, %p75
      %p77 = scmp.ne.s32.totalorder %s66, %s67
      %p78 = scmp.eq.s32.totalorder %s14, 0
      %p79 = por %p77, %p78
      %p80 = scmp.ne.s32.totalorder %s66, %s67
      %p81 = scmp.eq.s32.totalorder %s15, 1
      %p82 = por %p80, %p81
      %p84 = scmp.ne.s32.totalorder %s67, %s83
      %p85 = scmp.eq.s32.totalorder %s15, 0
      %p86 = por %p84, %p85
      %s87 = sadd.s32 %s16, %s17
      %s88 = sadd.s32 %s35, %s31
      %s89 = ssub.s32 %s87, %s88
      %p90 = scmp.eq.s32.totalorder %s89, 0
      %s92 = sadd.s32 %s91, 1
      %s93 = scalar_select %p90, %s91, %s92
      %p96 = pneg %p90
      %p97 = scmp.eq.s32.totalorder %s9, 1
      %p98 = por %p96, %p97
      %p99 = scmp.ne.s32.totalorder %s91, %s94
      %p100 = scmp.eq.s32.totalorder %s9, 0
      %p101 = por %p99, %p100
      %p102 = scmp.ne.s32.totalorder %s91, %s94
      %p103 = scmp.eq.s32.totalorder %s14, 1
      %p104 = por %p102, %p103
      %p105 = scmp.ne.s32.totalorder %s94, %s95
      %p106 = scmp.eq.s32.totalorder %s14, 0
      %p107 = por %p105, %p106
      %p108 = scmp.ne.s32.totalorder %s94, %s95
      %p109 = scmp.eq.s32.totalorder %s15, 1
      %p110 = por %p108, %p109
      %p112 = scmp.ne.s32.totalorder %s95, %s111
      %p113 = scmp.eq.s32.totalorder %s15, 0
      %p114 = por %p112, %p113
      %p115 = scmp.le.s32.totalorder 1, %s9
      %p116 = scmp.lt.s32.totalorder %s9, 3
      %p117 = pnand %p115, %p116
      %p118 = pneg %p117
      // Predicated region
      $region9: #{cwh_measurements.1} parent=5 // pred_check
        _
      $region10: #{cwh_measurements.1} parent=5 // pred_check_branch
        %120 = sbr.rel (%p117) target = $region12
      $region11: #{cwh_measurements.1} parent=5 // pred_region
        %s121 = ssub.s32 %s9, 1
        // Predicated region
        $region13: #{cwh_measurements.1} parent=11 // pred_check
          %p122 = pneg %p49
        $region14: #{cwh_measurements.1} parent=11 // pred_check_branch
          %124 = sbr.rel (%p122) target = $region16
        $region15: #{cwh_measurements.1} parent=11 // pred_region
          %s126 = ssub.s32 32, 32
          %127 = vsyncadd [#allocation3], %s126
          %s129 = sshll.u32 %s0, 4
          %s130 = int_to_ptr.vmem [resolvable:$true] %s129
          %132 = dma.vmem_to_smem %s130, 32, [#allocation2], [#allocation3]
        $region16: #{cwh_measurements.1} parent=11 // pred_fallthru
          _
      $region12: #{cwh_measurements.1} parent=5 // pred_fallthru
        _
      %p133 = scmp.lt.s32.totalorder %s9, 2
      // Predicated region
      $region17: #{cwh_measurements.1} parent=5 // pred_check
        %p134 = pneg %p133
      $region18: #{cwh_measurements.1} parent=5 // pred_check_branch
        %136 = sbr.rel (%p134) target = $region20
      $region19: #{cwh_measurements.1} parent=5 // pred_region
        // Predicated region
        $region21: #{cwh_measurements.1} parent=19 // pred_check
          %p137 = pneg %p73
        $region22: #{cwh_measurements.1} parent=19 // pred_check_branch
          %139 = sbr.rel (%p137) target = $region24
        $region23: #{cwh_measurements.1} parent=19 // pred_region
          %s140 = sadd.s32 %s17, %s18
          %p141 = scmp.lt.s32.totalorder %s16, 1
          %s142 = scalar_select %p141, %s16, 1
          %p143 = scmp.lt.s32.totalorder %s140, 0
          %s144 = scalar_select %p143, %s140, 0
          %s145 = smul.addr %s142, 9
          %s146 = sadd.s32 %s144, %s145
          %s147 = smul.addr %s146, 8
          %s148 = scalar_lea.vmem %s1, %s147
          %s149 = sadd.s32 %s17, %s18
        $region24: #{cwh_measurements.1} parent=19 // pred_fallthru
          _
      $region20: #{cwh_measurements.1} parent=5 // pred_fallthru
        _
      %p150 = scmp.le.s32.totalorder 1, %s9
      %p151 = scmp.lt.s32.totalorder %s9, 3
      %p152 = pnand %p150, %p151
      %p153 = pneg %p152
      // Predicated region
      $region25: #{cwh_measurements.1} parent=5 // pred_check
        _
      $region26: #{cwh_measurements.1} parent=5 // pred_check_branch
        %155 = sbr.rel (%p152) target = $region28
      $region27: #{cwh_measurements.1} parent=5 // pred_region
        %s156 = ssub.s32 %s9, 1
        // Predicated region
        $region29: #{cwh_measurements.1} parent=27 // pred_check
          %p157 = pneg %p49
        $region30: #{cwh_measurements.1} parent=27 // pred_check_branch
          %159 = sbr.rel (%p157) target = $region32
        $region31: #{cwh_measurements.1} parent=27 // pred_region
          %160 = dma.done [#allocation3], 32
        $region32: #{cwh_measurements.1} parent=27 // pred_fallthru
          _
        %161 = sfence
        %p162 = pneg %p49
        %p163 = pneg %p46
        %s164 = sadd.s32 %s20, %s21
        %p165 = scmp.lt.s32.totalorder %s19, 1
        %s166 = scalar_select %p165, %s19, 1
        %p167 = scmp.lt.s32.totalorder %s164, 0
        %s168 = scalar_select %p167, %s164, 0
        %s169 = smul.addr %s166, 9
        %s170 = sadd.s32 %s168, %s169
        %s171 = smul.addr %s170, 8
        %s172 = scalar_lea.vmem %s1, %s171
        %p173 = pneg %p79
        %p174 = pneg %p76
        %p175 = pneg %p107
        %p176 = pneg %p104
        %s177 = sadd.s32 %s19, %s20
        %p178 = scmp.lt.s32.totalorder %s177, 1
        %s179 = scalar_select %p178, %s177, 1
        %s180 = smul.addr %s179, 3
        %s181 = smul.addr %s180, 8
        %s182 = scalar_lea.vmem %s2, %s181
        %s183 = sadd.s32 %s20, %s21
        %p184 = scmp.lt.s32.totalorder %s19, 1
        %s185 = scalar_select %p184, %s19, 1
        %p186 = scmp.lt.s32.totalorder %s183, 0
        %s187 = scalar_select %p186, %s183, 0
        %s188 = smul.addr %s185, 9
        %s189 = sadd.s32 %s187, %s188
        %s190 = smul.addr %s189, 8
        %s191 = scalar_lea.vmem %s1, %s190
        %s192 = sadd.s32 %s20, %s21
        %s193 = sadd.s32 %s19, %s20
        %p194 = scmp.lt.s32.totalorder %s193, 1
        %s195 = scalar_select %p194, %s193, 1
        %s196 = smul.addr %s195, 3
        %s197 = smul.addr %s196, 8
        %s198 = scalar_lea.vmem %s2, %s197
        %s199 = sadd.s32 %s19, %s20
        %p200 = scmp.eq.s32.totalorder %s21, 0
        // Predicated region
        $region33: #{cwh_measurements.1} parent=27 // pred_check
          %p201 = pneg %p200
        $region34: #{cwh_measurements.1} parent=27 // pred_check_branch
          %203 = sbr.rel (%p201) target = $region36
        $region35: #{cwh_measurements.1} parent=27 // pred_region
          %204 = vst [vmem:[%s198] sm:$0xff] 0.0
          %205 = vst [vmem:[%s198 + $0x8] sm:$0xff] 0.0
          %206 = vst [vmem:[%s198 + $0x10] sm:$0xff] 0.0
        $region36: #{cwh_measurements.1} parent=27 // pred_fallthru
          _
        %s207 = smul.u32 %s19, 128
        %s208 = sld [smem:[#allocation2 + %s207]]
        %s209 = sadd.s32 %s207, 1
        %s210 = sld [smem:[#allocation2 + %s209]]
        %s211 = sadd.s32 %s207, 2
        %s212 = sld [smem:[#allocation2 + %s211]]
        %v213 = vld [vmem:[%s191] sm:$0xff]
        %s214 = scalar_lea.vmem %s191, 8
        %v215 = vld [vmem:[%s214] sm:$0xff]
        %s216 = scalar_lea.vmem %s191, 16
        %v217 = vld [vmem:[%s216] sm:$0xff]
        %s218 = scalar_lea.vmem %s191, 24
        %v219 = vld [vmem:[%s218] sm:$0xff]
        %s220 = scalar_lea.vmem %s191, 32
        %v221 = vld [vmem:[%s220] sm:$0xff]
        %s222 = scalar_lea.vmem %s191, 40
        %v223 = vld [vmem:[%s222] sm:$0xff]
        %s224 = scalar_lea.vmem %s191, 48
        %v225 = vld [vmem:[%s224] sm:$0xff]
        %s226 = scalar_lea.vmem %s191, 56
        %v227 = vld [vmem:[%s226] sm:$0xff]
        %s228 = scalar_lea.vmem %s191, 64
        %v229 = vld [vmem:[%s228] sm:$0xff]
        %v230 = vsub.f32 %v219, %v213
        %v231 = vsub.f32 %v223, %v217
        %v232 = vsub.f32 %v225, %v219
        %v233 = vsub.f32 %v229, %v223
        %v234 = vsub.f32 %v213, %v225
        %v235 = vsub.f32 %v217, %v229
        %v236 = vstv %s208
        %v237 = vsub.f32 %v215, %v236
        %v238 = vsub.f32 %v221, %v236
        %v239 = vsub.f32 %v227, %v236
        %v240 = vmul.f32 %v237, %v238
        %vm241 = vcmp.lt.f32.partialorder %v240, 0.0
        %v242 = vsub.f32 %v237, %v238
        %v243 = vrcp.pop %v242
        %v244 = vmul.f32 %v237, %v243
        %v245 = vmul.f32 %v244, %v230
        %v246 = vadd.f32 %v213, %v245
        %v247 = vmul.f32 %v244, %v231
        %v248 = vadd.f32 %v217, %v247
        %v249 = vmul.f32 %v238, %v239
        %vm250 = vcmp.lt.f32.partialorder %v249, 0.0
        %v251 = vsub.f32 %v238, %v239
        %v252 = vrcp.pop %v251
        %v253 = vmul.f32 %v238, %v252
        %v254 = vmul.f32 %v253, %v232
        %v255 = vadd.f32 %v219, %v254
        %v256 = vmul.f32 %v253, %v233
        %v257 = vadd.f32 %v223, %v256
        %v258 = vmul.f32 %v239, %v237
        %vm259 = vcmp.lt.f32.partialorder %v258, 0.0
        %v260 = vsub.f32 %v239, %v237
        %v261 = vrcp.pop %v260
        %v262 = vmul.f32 %v239, %v261
        %v263 = vmul.f32 %v262, %v234
        %v264 = vadd.f32 %v225, %v263
        %v265 = vmul.f32 %v262, %v235
        %v266 = vadd.f32 %v229, %v265
        %vm267 = vmand %vm241, %vm250
        %vm268 = vmand %vm250, %vm259
        %vm269 = vmand %vm259, %vm241
        %v270 = vsub.f32 %v246, %v255
        %v271 = vsel %vm267, %v270, 0.0
        %v272 = vsub.f32 %v255, %v264
        %v273 = vsel %vm268, %v272, 0.0
        %v274 = vadd.f32 %v271, %v273
        %v275 = vsub.f32 %v264, %v246
        %v276 = vsel %vm269, %v275, 0.0
        %v277 = vadd.f32 %v274, %v276
        %v278 = vsub.f32 %v248, %v257
        %v279 = vsel %vm267, %v278, 0.0
        %v280 = vsub.f32 %v257, %v266
        %v281 = vsel %vm268, %v280, 0.0
        %v282 = vadd.f32 %v279, %v281
        %v283 = vsub.f32 %v266, %v248
        %v284 = vsel %vm269, %v283, 0.0
        %v285 = vadd.f32 %v282, %v284
        %v286 = vmul.f32 %v277, %v277
        %v287 = vmul.f32 %v285, %v285
        %v288 = vadd.f32 %v286, %v287
        %v289 = vrsqrt.pop %v288
        %v290 = vmul.f32 %v288, %v289
        %vm291 = vcmp.eq.f32.partialorder %v288, inf
        %v292 = vsel %vm291, %v288, %v290
        %vm293 = vcmp.eq.f32.partialorder %v288, 0.0
        %v294 = vand.u32 %v288, 2147483648
        %v295 = vsel %vm293, %v294, %v292
        %v296 = vadd.f32 %v295, 0.0
        %v297 = vstv %s210
        %v298 = vsub.f32 %v215, %v297
        %v299 = vsub.f32 %v221, %v297
        %v300 = vsub.f32 %v227, %v297
        %v301 = vmul.f32 %v298, %v299
        %vm302 = vcmp.lt.f32.partialorder %v301, 0.0
        %v303 = vsub.f32 %v298, %v299
        %v304 = vrcp.pop %v303
        %v305 = vmul.f32 %v298, %v304
        %v306 = vmul.f32 %v305, %v230
        %v307 = vadd.f32 %v213, %v306
        %v308 = vmul.f32 %v305, %v231
        %v309 = vadd.f32 %v217, %v308
        %v310 = vmul.f32 %v299, %v300
        %vm311 = vcmp.lt.f32.partialorder %v310, 0.0
        %v312 = vsub.f32 %v299, %v300
        %v313 = vrcp.pop %v312
        %v314 = vmul.f32 %v299, %v313
        %v315 = vmul.f32 %v314, %v232
        %v316 = vadd.f32 %v219, %v315
        %v317 = vmul.f32 %v314, %v233
        %v318 = vadd.f32 %v223, %v317
        %v319 = vmul.f32 %v300, %v298
        %vm320 = vcmp.lt.f32.partialorder %v319, 0.0
        %v321 = vsub.f32 %v300, %v298
        %v322 = vrcp.pop %v321
        %v323 = vmul.f32 %v300, %v322
        %v324 = vmul.f32 %v323, %v234
        %v325 = vadd.f32 %v225, %v324
        %v326 = vmul.f32 %v323, %v235
        %v327 = vadd.f32 %v229, %v326
        %vm328 = vmand %vm302, %vm311
        %vm329 = vmand %vm311, %vm320
        %vm330 = vmand %vm320, %vm302
        %v331 = vsub.f32 %v307, %v316
        %v332 = vsel %vm328, %v331, 0.0
        %v333 = vsub.f32 %v316, %v325
        %v334 = vsel %vm329, %v333, 0.0
        %v335 = vadd.f32 %v332, %v334
        %v336 = vsub.f32 %v325, %v307
        %v337 = vsel %vm330, %v336, 0.0
        %v338 = vadd.f32 %v335, %v337
        %v339 = vsub.f32 %v309, %v318
        %v340 = vsel %vm328, %v339, 0.0
        %v341 = vsub.f32 %v318, %v327
        %v342 = vsel %vm329, %v341, 0.0
        %v343 = vadd.f32 %v340, %v342
        %v344 = vsub.f32 %v327, %v309
        %v345 = vsel %vm330, %v344, 0.0
        %v346 = vadd.f32 %v343, %v345
        %v347 = vmul.f32 %v338, %v338
        %v348 = vmul.f32 %v346, %v346
        %v349 = vadd.f32 %v347, %v348
        %v350 = vrsqrt.pop %v349
        %v351 = vmul.f32 %v349, %v350
        %vm352 = vcmp.eq.f32.partialorder %v349, inf
        %v353 = vsel %vm352, %v349, %v351
        %vm354 = vcmp.eq.f32.partialorder %v349, 0.0
        %v355 = vand.u32 %v349, 2147483648
        %v356 = vsel %vm354, %v355, %v353
        %v357 = vadd.f32 %v356, 0.0
        %v358 = vstv %s212
        %v359 = vsub.f32 %v215, %v358
        %v360 = vsub.f32 %v221, %v358
        %v361 = vsub.f32 %v227, %v358
        %v362 = vmul.f32 %v359, %v360
        %vm363 = vcmp.lt.f32.partialorder %v362, 0.0
        %v364 = vsub.f32 %v359, %v360
        %v365 = vrcp.pop %v364
        %v366 = vmul.f32 %v359, %v365
        %v367 = vmul.f32 %v366, %v230
        %v368 = vadd.f32 %v213, %v367
        %v369 = vmul.f32 %v366, %v231
        %v370 = vadd.f32 %v217, %v369
        %v371 = vmul.f32 %v360, %v361
        %vm372 = vcmp.lt.f32.partialorder %v371, 0.0
        %v373 = vsub.f32 %v360, %v361
        %v374 = vrcp.pop %v373
        %v375 = vmul.f32 %v360, %v374
        %v376 = vmul.f32 %v375, %v232
        %v377 = vadd.f32 %v219, %v376
        %v378 = vmul.f32 %v375, %v233
        %v379 = vadd.f32 %v223, %v378
        %v380 = vmul.f32 %v361, %v359
        %vm381 = vcmp.lt.f32.partialorder %v380, 0.0
        %v382 = vsub.f32 %v361, %v359
        %v383 = vrcp.pop %v382
        %v384 = vmul.f32 %v361, %v383
        %v385 = vmul.f32 %v384, %v234
        %v386 = vadd.f32 %v225, %v385
        %v387 = vmul.f32 %v384, %v235
        %v388 = vadd.f32 %v229, %v387
        %vm389 = vmand %vm363, %vm372
        %vm390 = vmand %vm372, %vm381
        %vm391 = vmand %vm381, %vm363
        %v392 = vsub.f32 %v368, %v377
        %v393 = vsel %vm389, %v392, 0.0
        %v394 = vsub.f32 %v377, %v386
        %v395 = vsel %vm390, %v394, 0.0
        %v396 = vadd.f32 %v393, %v395
        %v397 = vsub.f32 %v386, %v368
        %v398 = vsel %vm391, %v397, 0.0
        %v399 = vadd.f32 %v396, %v398
        %v400 = vsub.f32 %v370, %v379
        %v401 = vsel %vm389, %v400, 0.0
        %v402 = vsub.f32 %v379, %v388
        %v403 = vsel %vm390, %v402, 0.0
        %v404 = vadd.f32 %v401, %v403
        %v405 = vsub.f32 %v388, %v370
        %v406 = vsel %vm391, %v405, 0.0
        %v407 = vadd.f32 %v404, %v406
        %v408 = vmul.f32 %v399, %v399
        %v409 = vmul.f32 %v407, %v407
        %v410 = vadd.f32 %v408, %v409
        %v411 = vrsqrt.pop %v410
        %v412 = vmul.f32 %v410, %v411
        %vm413 = vcmp.eq.f32.partialorder %v410, inf
        %v414 = vsel %vm413, %v410, %v412
        %vm415 = vcmp.eq.f32.partialorder %v410, 0.0
        %v416 = vand.u32 %v410, 2147483648
        %v417 = vsel %vm415, %v416, %v414
        %v418 = vadd.f32 %v417, 0.0
        %v419 = vld [vmem:[%s198] sm:$0xff]
        %v420 = vadd.f32 %v419, %v296
        %421 = vst [vmem:[%s198] sm:$0xff] %v420
        %s422 = scalar_lea.vmem %s198, 8
        %v423 = vld [vmem:[%s422] sm:$0xff]
        %v424 = vadd.f32 %v423, %v357
        %425 = vst [vmem:[%s422] sm:$0xff] %v424
        %s426 = scalar_lea.vmem %s198, 16
        %v427 = vld [vmem:[%s426] sm:$0xff]
        %v428 = vadd.f32 %v427, %v418
        %429 = vst [vmem:[%s426] sm:$0xff] %v428
        %s430 = sadd.s32 %s19, %s20
        %p431 = scmp.lt.s32.totalorder %s430, 1
        %s432 = scalar_select %p431, %s430, 1
        %s433 = smul.addr %s432, 3
        %s434 = smul.addr %s433, 8
        %s435 = scalar_lea.vmem %s2, %s434
        // Predicated region
        $region37: #{cwh_measurements.1} parent=27 // pred_check
          %p436 = pneg %p104
        $region38: #{cwh_measurements.1} parent=27 // pred_check_branch
          %438 = sbr.rel (%p436) target = $region40
        $region39: #{cwh_measurements.1} parent=27 // pred_region
          %s439 = sadd.s32 %s19, %s20
        $region40: #{cwh_measurements.1} parent=27 // pred_fallthru
          _
      $region28: #{cwh_measurements.1} parent=5 // pred_fallthru
        _
      %p440 = scmp.le.s32.totalorder 2, %s9
      // Predicated region
      $region41: #{cwh_measurements.1} parent=5 // pred_check
        %p441 = pneg %p440
      $region42: #{cwh_measurements.1} parent=5 // pred_check_branch
        %443 = sbr.rel (%p441) target = $region44
      $region43: #{cwh_measurements.1} parent=5 // pred_region
        %s444 = ssub.s32 %s9, 2
        // Predicated region
        $region45: #{cwh_measurements.1} parent=43 // pred_check
          %p445 = pneg %p110
        $region46: #{cwh_measurements.1} parent=43 // pred_check_branch
          %447 = sbr.rel (%p445) target = $region48
        $region47: #{cwh_measurements.1} parent=43 // pred_region
          %s448 = sadd.s32 %s22, %s23
          %p449 = scmp.lt.s32.totalorder %s448, 1
          %s450 = scalar_select %p449, %s448, 1
          %s451 = smul.addr %s450, 3
          %s452 = smul.addr %s451, 8
          %s453 = scalar_lea.vmem %s2, %s452
        $region48: #{cwh_measurements.1} parent=43 // pred_fallthru
          _
      $region44: #{cwh_measurements.1} parent=5 // pred_fallthru
        _
    $region6: #{cwh_measurements.1} parent=1 // loop_footer
      %s13 = sadd.s32 1, %s9
    $region7: #{cwh_measurements.1} parent=1 // loop_footer_branch
      %8 = sbr.rel target = $region3
    $region8: #{cwh_measurements.1} parent=1 // loop_exit
      _
    %454 = vsyncpa [#allocation3], 1
    %s455 = scalar_lea.sflag [#allocation3], 1
    %456 = vsyncpa %s455, 1

</llo_original>
